<compile_context>
chip_gen: v5e
topology: v5e:2x2
jax: 0.10.0
libtpu: 0.0.40
codegen_flags: <defaults>
</compile_context>

<pallas_src>
import functools

import jax
import jax.numpy as jnp
from jax.experimental import pallas as pl
from jax.experimental.pallas import tpu as pltpu


def _round_up(x, m):
    return ((x + m - 1) // m) * m


def _patch_embed_kernel(p_ref, w_ref, b_ref, o_ref):
    # Hot path: patch-rows @ projection-weight on the MXU with f32 accumulation,
    # bias added in f32, then cast to the output dtype.
    acc = jnp.dot(p_ref[...], w_ref[...], preferred_element_type=jnp.float32)
    o_ref[...] = (acc + b_ref[...]).astype(o_ref.dtype)


def _pick_tile_m(M, tile_m_max, sublane=16, want_min_steps=2):
    """Pick the M tile: prefer a 16-aligned divisor of M (no padding) that leaves
    at least `want_min_steps` grid steps (megacore balance on v7x)."""
    limit = max(min(tile_m_max, M), sublane)
    best_div = None
    cand = (limit // sublane) * sublane
    while cand >= sublane:
        if M % cand == 0:
            if best_div is None:
                best_div = cand
            if M // cand >= want_min_steps:
                return cand, False
        cand -= sublane
    if best_div is not None:
        return best_div, False
    # Rare fallback (no 16-aligned divisor): pad M up to a small tile multiple,
    # keeping >=2 grid steps when M is large enough.
    tm = min(tile_m_max, _round_up(M, sublane))
    if M > 2 * sublane:
        tm = min(tm, _round_up(pl.cdiv(M, 2), sublane))
    tm = max((tm // sublane) * sublane, sublane)
    return tm, True


def _cap_tile_m_for_vmem(tile_m, K, te, cbytes, obytes, budget_bytes):
    """Bound tm so the double-buffered working set fits the VMEM budget."""
    fixed = 2 * K * te * cbytes + 2 * te * 4          # weight + bias buffers
    per_row = 2 * K * cbytes + 2 * te * obytes        # patch-row + output-row buffers
    cap = (budget_bytes - fixed) // max(per_row, 1)
    cap = max((cap // 16) * 16, 16)
    return min(tile_m, cap)


@functools.partial(
    jax.jit, static_argnames=("patch_size", "tile_m", "compute_dtype", "out_dtype")
)
def patch_embed(x, weight, bias, *, patch_size=16, tile_m=1024,
                compute_dtype=jnp.bfloat16, out_dtype=None):
    """PatchEmbed forward.

    x: [B, C, H, W] (NCHW, like PyTorch). weight: [E, C, ph, pw]. bias: [E].
    Returns [B, num_patches, E] (flatten=True; norm_layer default is Identity).
    Note: compute_dtype=bf16 is a deliberate fast-path choice; pass
    compute_dtype=jnp.float32 to match PyTorch f32 Conv2d numerics exactly.
    """
    B, C, H, W = x.shape
    E = weight.shape[0]
    ph = pw = patch_size
    gh, gw = H // ph, W // pw
    num_patches = gh * gw
    K = C * ph * pw
    M = B * num_patches
    out_dtype = x.dtype if out_dtype is None else out_dtype

    cbytes = jnp.dtype(compute_dtype).itemsize
    obytes = jnp.dtype(out_dtype).itemsize

    # ---- host-side layout glue (cast fuses into the single transpose pass) ----
    # im2col of non-overlapping patches:
    #   [B, C, gh, ph, gw, pw] -> [B, gh, gw, C, ph, pw] -> [M, K]
    xc = x.astype(compute_dtype)
    patches = xc.reshape(B, C, gh, ph, gw, pw)
    patches = patches.transpose(0, 2, 4, 1, 3, 5).reshape(M, K)

    # Conv weight [E, C, ph, pw] -> matmul weight [K, E]; pad E to a multiple of
    # 128 so output stores stay lane-dense (unmasked vst) on all generations.
    E_pad = _round_up(E, 128)
    w_mat = weight.reshape(E, K).T.astype(compute_dtype)
    b_mat = bias.reshape(1, E).astype(jnp.float32)
    if E_pad != E:
        w_mat = jnp.pad(w_mat, ((0, 0), (0, E_pad - E)))
        b_mat = jnp.pad(b_mat, ((0, 0), (0, E_pad - E)))

    # ---- tiling ----
    # Keep the whole [K, E_pad] weight VMEM-resident whenever it fits; only tile
    # E for very wide embeds, and then put M innermost so the weight slice is
    # reused across consecutive grid steps (no re-DMA).
    weight_budget = 16 * 1024 * 1024
    if K * E_pad * cbytes <= weight_budget:
        te = E_pad
    elif E_pad % 256 == 0:
        te = 256
    else:
        te = 128
    e_tiles = E_pad // te

    vmem_budget = 40 * 1024 * 1024            # headroom under the 48 MiB cap (v7x: 64 MiB physical)
    tm_cap = _cap_tile_m_for_vmem(tile_m, K, te, cbytes, obytes, vmem_budget)
    tm, need_pad = _pick_tile_m(M, tm_cap)
    M_pad = _round_up(M, tm)
    if need_pad and M_pad != M:
        patches = jnp.pad(patches, ((0, M_pad - M), (0, 0)))
    m_tiles = M_pad // tm

    grid = (e_tiles, m_tiles)                 # M is the innermost (fastest) axis

    cost = pl.CostEstimate(
        flops=2 * M_pad * K * E_pad,
        transcendentals=0,
        bytes_accessed=(M_pad * K * cbytes * e_tiles   # patch matrix (re-read per E tile)
                        + K * E_pad * cbytes           # weight, read once per E tile
                        + M_pad * E_pad * obytes       # output
                        + E_pad * 4),                  # bias
    )

    out = pl.pallas_call(
        _patch_embed_kernel,
        out_shape=jax.ShapeDtypeStruct((M_pad, E_pad), out_dtype),
        grid_spec=pltpu.PrefetchScalarGridSpec(
            num_scalar_prefetch=0,
            grid=grid,
            in_specs=[
                pl.BlockSpec((tm, K), lambda j, i: (i, 0)),    # patch-row tile
                pl.BlockSpec((K, te), lambda j, i: (0, j)),    # weight (resident over i)
                pl.BlockSpec((1, te), lambda j, i: (0, j)),    # bias slice
            ],
            out_specs=pl.BlockSpec((tm, te), lambda j, i: (i, j)),
        ),
        compiler_params=pltpu.CompilerParams(
            dimension_semantics=("parallel", "parallel"),
            vmem_limit_bytes=48 * 1024 * 1024,
        ),
        cost_estimate=cost,
    )(patches, w_mat, b_mat)

    if M_pad != M or E_pad != E:
        out = out[:M, :E]
    # flatten=True semantics: (B, num_patches, embed_dim); norm is Identity.
    return out.reshape(B, num_patches, E)


def _reference(x, weight, bias, patch_size):
    """Pure-JAX reference matching PyTorch Conv2d(stride=kernel)+flatten+transpose."""
    B, C, H, W = x.shape
    E = weight.shape[0]
    ph = pw = patch_size
    gh, gw = H // ph, W // pw
    patches = x.reshape(B, C, gh, ph, gw, pw).transpose(0, 2, 4, 1, 3, 5)
    patches = patches.reshape(B, gh * gw, C * ph * pw)
    w_mat = weight.reshape(E, C * ph * pw)
    return jnp.einsum("bnk,ek->bne", patches, w_mat) + bias[None, None, :]


if __name__ == "__main__":
    key = jax.random.PRNGKey(0)
    keys = jax.random.split(key, 9)

    def make_case(B, C, H, W, patch_size, E, ks):
        kx, kw, kb = ks
        x = jax.random.normal(kx, (B, C, H, W), dtype=jnp.float32)
        weight = jax.random.normal(
            kw, (E, C, patch_size, patch_size), dtype=jnp.float32) * 0.02
        bias = jax.random.normal(kb, (E,), dtype=jnp.float32) * 0.02
        ref = _reference(x, weight, bias, patch_size)
        shape = (B, (H // patch_size) * (W // patch_size), E)
        return x, weight, bias, ref, shape

    # Case 1: module-consistent small config (B=2, C=4, 16x16 image, patch 4,
    # E=128).  f32 path checks kernel math tightly; bf16 path is the fast path.
    x, w, b, ref, shape = make_case(2, 4, 16, 16, 4, 128, keys[:3])
    out32 = jax.block_until_ready(
        patch_embed(x, w, b, patch_size=4, compute_dtype=jnp.float32))
    assert out32.shape == shape, out32.shape
    assert jnp.allclose(out32, ref, atol=1e-4, rtol=1e-4), "case1 f32 mismatch"
    outbf = jax.block_until_ready(patch_embed(x, w, b, patch_size=4))
    assert outbf.shape == shape, outbf.shape
    assert jnp.allclose(outbf, ref, atol=5e-2, rtol=5e-2), "case1 bf16 mismatch"

    # Case 2: M=75 (no 16-aligned divisor -> exercises the rare pad fallback)
    # and E=384 (multi-128 embed kept fully VMEM-resident).
    x, w, b, ref, shape = make_case(3, 4, 20, 20, 4, 384, keys[3:6])
    out32 = jax.block_until_ready(
        patch_embed(x, w, b, patch_size=4, compute_dtype=jnp.float32))
    assert out32.shape == shape, out32.shape
    assert jnp.allclose(out32, ref, atol=1e-4, rtol=1e-4), "case2 f32 mismatch"

    # Case 3: E=96 (not a multiple of 128 -> exercises E padding + slice) with
    # bf16 compute and bf16 output dtype.
    x, w, b, ref, shape = make_case(2, 3, 16, 16, 4, 96, keys[6:9])
    outbf = jax.block_until_ready(
        patch_embed(x, w, b, patch_size=4, out_dtype=jnp.bfloat16))
    assert outbf.shape == shape, outbf.shape
    assert outbf.dtype == jnp.bfloat16
    assert jnp.allclose(outbf.astype(jnp.float32), ref, atol=5e-2, rtol=5e-2), \
        "case3 bf16 mismatch"

    print("KERNEL_OK")
</pallas_src>

<mosaic_0001>
module attributes {stable_mosaic.version = 11 : i64} {
  func.func @_patch_embed_kernel(%arg0: i32, %arg1: i32, %arg2: memref<16x64xf32, #tpu.memory_space<vmem>>, %arg3: memref<64x128xf32, #tpu.memory_space<vmem>>, %arg4: memref<1x128xf32, #tpu.memory_space<vmem>>, %arg5: memref<16x128xf32, #tpu.memory_space<vmem>>) attributes {dimension_semantics = [#tpu.dimension_semantics<parallel>, #tpu.dimension_semantics<parallel>], iteration_bounds = array<i64: 1, 2>, scalar_prefetch = 0 : i64, scratch_operands = 0 : i64, tpu.core_type = #tpu.core_type<tc>, window_params = [{transform_indices = @transform_0, window_bounds = array<i64: 16, 64>}, {transform_indices = @transform_1, window_bounds = array<i64: 64, 128>}, {transform_indices = @transform_2, window_bounds = array<i64: 1, 128>}, {transform_indices = @transform_3, window_bounds = array<i64: 16, 128>}]} {
    %c0 = arith.constant 0 : index
    %c0_0 = arith.constant 0 : index
    %0 = vector.load %arg2[%c0, %c0_0] : memref<16x64xf32, #tpu.memory_space<vmem>>, vector<16x64xf32>
    %c0_1 = arith.constant 0 : index
    %c0_2 = arith.constant 0 : index
    %1 = vector.load %arg3[%c0_1, %c0_2] : memref<64x128xf32, #tpu.memory_space<vmem>>, vector<64x128xf32>
    %cst = arith.constant dense<0.000000e+00> : vector<16x128xf32>
    %2 = tpu.matmul %0, %1, %cst {dimension_numbers = #tpu.dot_dimension_numbers<[1], [0], [0], [1], [0, 0, 1, 1], [], []>} : vector<16x64xf32>, vector<64x128xf32>, vector<16x128xf32> -> vector<16x128xf32>
    %c0_3 = arith.constant 0 : index
    %c0_4 = arith.constant 0 : index
    %3 = vector.load %arg4[%c0_3, %c0_4] : memref<1x128xf32, #tpu.memory_space<vmem>>, vector<1x128xf32>
    %4 = vector.broadcast %3 : vector<1x128xf32> to vector<16x128xf32>
    %5 = arith.addf %2, %4 : vector<16x128xf32>
    %c0_5 = arith.constant 0 : index
    %c0_6 = arith.constant 0 : index
    %6 = vector.load %arg5[%c0_5, %c0_6] : memref<16x128xf32, #tpu.memory_space<vmem>>, vector<16x128xf32>
    tpu.vector_store %arg5[%c0_5, %c0_6], %5 {strides = array<i32>} : memref<16x128xf32, #tpu.memory_space<vmem>>, vector<16x128xf32>,
    return
  }
  func.func @transform_0(%arg0: i32, %arg1: i32) -> (i32, i32) {
    %c0_i32 = arith.constant 0 : i32
    %c0_i32_0 = arith.constant 0 : i32
    return %arg1, %c0_i32 : i32, i32
  }
  func.func @transform_1(%arg0: i32, %arg1: i32) -> (i32, i32) {
    %c0_i32 = arith.constant 0 : i32
    %c0_i32_0 = arith.constant 0 : i32
    return %c0_i32, %arg0 : i32, i32
  }
  func.func @transform_2(%arg0: i32, %arg1: i32) -> (i32, i32) {
    %c0_i32 = arith.constant 0 : i32
    %c0_i32_0 = arith.constant 0 : i32
    return %c0_i32, %arg0 : i32, i32
  }
  func.func @transform_3(%arg0: i32, %arg1: i32) -> (i32, i32) {
    %c0_i32 = arith.constant 0 : i32
    return %arg1, %arg0 : i32, i32
  }
}

</mosaic_0001>

<llo_original>
// kernel: patch_embed.1
$region0: #{patch_embed.1}
  #allocation0 [shape = 'u32[]', space=smem, size = 0x4, offset = 0x4, fixed_abs, tag = 'smem constant byte address 0x4 - core index']
  #allocation1 [shape = 'u32[72,128]{1,0:T(1,128)}', space=vmem, size = 0x9000, scoped, tag = 'internal scratch']
  %s0 = inlined_call_operand.vmem [shape: f32[32,64], index: 0, kind: input, shape index: {}]
  %s1 = inlined_call_operand.vmem [shape: f32[64,128], index: 1, kind: input, shape index: {}]
  %s2 = inlined_call_operand.vmem [shape: f32[1,128], index: 2, kind: input, shape index: {}]
  %s3 = inlined_call_operand.hbm [shape: f32[32,128], index: 3, kind: output, shape index: {}]
  %s4 = sld [smem:[#allocation0]]
  $region45: #{patch_embed.1} parent=0
    _
  %s6 = ssub.s32 1, %s4
  %s7 = scalar_select 0, %s6, %s4
  $region1: #{patch_embed.1} parent=0
    #allocation2 [shape = 'u8[16384]{0}', space=vmem, size = 0x4000, scoped, tag = 'output window, operand 0']
    #allocation3 [shape = 's32[2]{0}', space=sflag, size = 0x8, scoped, tag = 'scoped memory for patch_embed.1']
    %8 = vsyncpa [#allocation3], 0
    %s9 = scalar_lea.sflag [#allocation3], 1
    %10 = vsyncpa %s9, 0
    loop: start=0, step=1, limit=4
    $region2: #{patch_embed.1} parent=1 // loop_pre_header
      _
    $region3: #{patch_embed.1} parent=1 // loop_header
      %s12 = sphi 0, %s16
      %p13 = scmp.ge.s32.totalorder %s12, 4
      %s19 = sphi 0, %s31
      %s20 = sphi 0, %s27
      %s21 = sphi 0, %s19
      %s22 = sphi 0, %s20
      %s23 = sphi 0, %s21
      %s24 = sphi 0, %s22
      %s34 = sphi 0, %s36
      %s37 = sphi 0, %s34
      %s38 = sphi 0, %s37
      %s54 = sphi 0, %s38
      %s60 = sphi 0, %s62
      %s63 = sphi 0, %s60
      %s64 = sphi 0, %s63
      %s80 = sphi 0, %s64
      %s86 = sphi 0, %s88
      %s89 = sphi 0, %s86
      %s90 = sphi 0, %s89
      %s106 = sphi 0, %s90
      %s114 = sphi 0, %s116
      %s117 = sphi 0, %s114
      %s118 = sphi 0, %s117
      %s134 = sphi 0, %s118
    $region4: #{patch_embed.1} parent=1 // loop_header_branch
      %15 = sbr.rel (%p13) target = $region8
    $region5: #{patch_embed.1} parent=1 // loop_body
      %s17 = ssub.s32 %s12, 1
      %s18 = ssub.s32 %s12, 2
      %s25 = sadd.s32 1, %s20
      %p26 = scmp.ge.s32.totalorder %s25, 2
      %s27 = scalar_select %p26, 0, %s25
      %s28 = sadd.s32 1, %s19
      %s29 = scalar_select %p26, %s28, %s19
      %p30 = scmp.ge.s32.totalorder %s29, 1
      %s31 = scalar_select %p30, 0, %s29
      %s32 = ssub.s32 %s20, %s27
      %p33 = scmp.eq.s32.totalorder %s32, 0
      %s35 = sadd.s32 %s34, 1
      %s36 = scalar_select %p33, %s34, %s35
      %p39 = pneg %p33
      %p40 = scmp.eq.s32.totalorder %s12, 1
      %p41 = por %p39, %p40
      %p42 = scmp.ne.s32.totalorder %s34, %s37
      %p43 = scmp.eq.s32.totalorder %s12, 0
      %p44 = por %p42, %p43
      %p45 = scmp.ne.s32.totalorder %s34, %s37
      %p46 = scmp.eq.s32.totalorder %s17, 1
      %p47 = por %p45, %p46
      %p48 = scmp.ne.s32.totalorder %s37, %s38
      %p49 = scmp.eq.s32.totalorder %s17, 0
      %p50 = por %p48, %p49
      %p51 = scmp.ne.s32.totalorder %s37, %s38
      %p52 = scmp.eq.s32.totalorder %s18, 1
      %p53 = por %p51, %p52
      %p55 = scmp.ne.s32.totalorder %s38, %s54
      %p56 = scmp.eq.s32.totalorder %s18, 0
      %p57 = por %p55, %p56
      %s58 = ssub.s32 %s19, %s31
      %p59 = scmp.eq.s32.totalorder %s58, 0
      %s61 = sadd.s32 %s60, 1
      %s62 = scalar_select %p59, %s60, %s61
      %p65 = pneg %p59
      %p66 = scmp.eq.s32.totalorder %s12, 1
      %p67 = por %p65, %p66
      %p68 = scmp.ne.s32.totalorder %s60, %s63
      %p69 = scmp.eq.s32.totalorder %s12, 0
      %p70 = por %p68, %p69
      %p71 = scmp.ne.s32.totalorder %s60, %s63
      %p72 = scmp.eq.s32.totalorder %s17, 1
      %p73 = por %p71, %p72
      %p74 = scmp.ne.s32.totalorder %s63, %s64
      %p75 = scmp.eq.s32.totalorder %s17, 0
      %p76 = por %p74, %p75
      %p77 = scmp.ne.s32.totalorder %s63, %s64
      %p78 = scmp.eq.s32.totalorder %s18, 1
      %p79 = por %p77, %p78
      %p81 = scmp.ne.s32.totalorder %s64, %s80
      %p82 = scmp.eq.s32.totalorder %s18, 0
      %p83 = por %p81, %p82
      %s84 = ssub.s32 %s19, %s31
      %p85 = scmp.eq.s32.totalorder %s84, 0
      %s87 = sadd.s32 %s86, 1
      %s88 = scalar_select %p85, %s86, %s87
      %p91 = pneg %p85
      %p92 = scmp.eq.s32.totalorder %s12, 1
      %p93 = por %p91, %p92
      %p94 = scmp.ne.s32.totalorder %s86, %s89
      %p95 = scmp.eq.s32.totalorder %s12, 0
      %p96 = por %p94, %p95
      %p97 = scmp.ne.s32.totalorder %s86, %s89
      %p98 = scmp.eq.s32.totalorder %s17, 1
      %p99 = por %p97, %p98
      %p100 = scmp.ne.s32.totalorder %s89, %s90
      %p101 = scmp.eq.s32.totalorder %s17, 0
      %p102 = por %p100, %p101
      %p103 = scmp.ne.s32.totalorder %s89, %s90
      %p104 = scmp.eq.s32.totalorder %s18, 1
      %p105 = por %p103, %p104
      %p107 = scmp.ne.s32.totalorder %s90, %s106
      %p108 = scmp.eq.s32.totalorder %s18, 0
      %p109 = por %p107, %p108
      %s110 = ssub.s32 %s20, %s27
      %s111 = ssub.s32 %s19, %s31
      %s112 = sor.u32 %s110, %s111
      %p113 = scmp.eq.s32.totalorder %s112, 0
      %s115 = sadd.s32 %s114, 1
      %s116 = scalar_select %p113, %s114, %s115
      %p119 = pneg %p113
      %p120 = scmp.eq.s32.totalorder %s12, 1
      %p121 = por %p119, %p120
      %p122 = scmp.ne.s32.totalorder %s114, %s117
      %p123 = scmp.eq.s32.totalorder %s12, 0
      %p124 = por %p122, %p123
      %p125 = scmp.ne.s32.totalorder %s114, %s117
      %p126 = scmp.eq.s32.totalorder %s17, 1
      %p127 = por %p125, %p126
      %p128 = scmp.ne.s32.totalorder %s117, %s118
      %p129 = scmp.eq.s32.totalorder %s17, 0
      %p130 = por %p128, %p129
      %p131 = scmp.ne.s32.totalorder %s117, %s118
      %p132 = scmp.eq.s32.totalorder %s18, 1
      %p133 = por %p131, %p132
      %p135 = scmp.ne.s32.totalorder %s118, %s134
      %p136 = scmp.eq.s32.totalorder %s18, 0
      %p137 = por %p135, %p136
      %p138 = scmp.le.s32.totalorder 1, %s12
      %p139 = scmp.lt.s32.totalorder %s12, 3
      %p140 = pnand %p138, %p139
      %p141 = pneg %p140
      // Predicated region
      $region9: #{patch_embed.1} parent=5 // pred_check
        _
      $region10: #{patch_embed.1} parent=5 // pred_check_branch
        %143 = sbr.rel (%p140) target = $region12
      $region11: #{patch_embed.1} parent=5 // pred_region
        %s144 = ssub.s32 %s12, 1
        // Predicated region
        $region13: #{patch_embed.1} parent=11 // pred_check
          %p145 = pneg %p76
        $region14: #{patch_embed.1} parent=11 // pred_check_branch
          %147 = sbr.rel (%p145) target = $region16
        $region15: #{patch_embed.1} parent=11 // pred_region
          %p148 = scmp.lt.s32.totalorder %s21, 0
          %s149 = scalar_select %p148, %s21, 0
          %s150 = smul.addr %s149, 8
          %s151 = scalar_lea.vmem %s1, %s150
        $region16: #{patch_embed.1} parent=11 // pred_fallthru
          _
        // Predicated region
        $region17: #{patch_embed.1} parent=11 // pred_check
          %p152 = pneg %p102
        $region18: #{patch_embed.1} parent=11 // pred_check_branch
          %154 = sbr.rel (%p152) target = $region20
        $region19: #{patch_embed.1} parent=11 // pred_region
          %p155 = scmp.lt.s32.totalorder %s21, 0
          %s156 = scalar_select %p155, %s21, 0
          %s157 = scalar_lea.vmem %s2, %s156
        $region20: #{patch_embed.1} parent=11 // pred_fallthru
          _
      $region12: #{patch_embed.1} parent=5 // pred_fallthru
        _
      %p158 = scmp.lt.s32.totalorder %s12, 2
      // Predicated region
      $region21: #{patch_embed.1} parent=5 // pred_check
        %p159 = pneg %p158
      $region22: #{patch_embed.1} parent=5 // pred_check_branch
        %161 = sbr.rel (%p159) target = $region24
      $region23: #{patch_embed.1} parent=5 // pred_region
        // Predicated region
        $region25: #{patch_embed.1} parent=23 // pred_check
          %p162 = pneg %p44
        $region26: #{patch_embed.1} parent=23 // pred_check_branch
          %164 = sbr.rel (%p162) target = $region28
        $region27: #{patch_embed.1} parent=23 // pred_region
          %s165 = smul.u32 2, %s20
          %p166 = scmp.lt.s32.totalorder %s165, 3
          %s167 = scalar_select %p166, %s165, 3
          %s168 = smul.addr %s167, 8
          %s169 = scalar_lea.vmem %s0, %s168
          %s170 = smul.u32 2, %s20
        $region28: #{patch_embed.1} parent=23 // pred_fallthru
          _
      $region24: #{patch_embed.1} parent=5 // pred_fallthru
        _
      %p171 = scmp.le.s32.totalorder 1, %s12
      %p172 = scmp.lt.s32.totalorder %s12, 3
      %p173 = pnand %p171, %p172
      %p174 = pneg %p173
      // Predicated region
      $region29: #{patch_embed.1} parent=5 // pred_check
        _
      $region30: #{patch_embed.1} parent=5 // pred_check_branch
        %176 = sbr.rel (%p173) target = $region32
      $region31: #{patch_embed.1} parent=5 // pred_region
        %s177 = ssub.s32 %s12, 1
        %s178 = smul.u32 2, %s22
        %p179 = scmp.lt.s32.totalorder %s178, 3
        %s180 = scalar_select %p179, %s178, 3
        %s181 = smul.addr %s180, 8
        %s182 = scalar_lea.vmem %s0, %s181
        %p183 = pneg %p50
        %p184 = pneg %p47
        %p185 = scmp.lt.s32.totalorder %s21, 0
        %s186 = scalar_select %p185, %s21, 0
        %s187 = smul.addr %s186, 8
        %s188 = scalar_lea.vmem %s1, %s187
        %p189 = pneg %p76
        %p190 = pneg %p73
        %p191 = scmp.lt.s32.totalorder %s21, 0
        %s192 = scalar_select %p191, %s21, 0
        %s193 = scalar_lea.vmem %s2, %s192
        %p194 = pneg %p102
        %p195 = pneg %p99
        %p196 = pneg %p130
        %p197 = pneg %p127
        %s198 = sand.u32 %s117, 1
        %s199 = scalar_lea.sflag [#allocation3], %s198
        %s200 = sand.u32 %s117, 1
        %s201 = smul.addr %s200, 16
        %s202 = scalar_lea.vmem [#allocation2], %s201
        %s203 = smul.u32 2, %s22
        %p204 = scmp.lt.s32.totalorder %s203, 3
        %s205 = scalar_select %p204, %s203, 3
        %s206 = smul.addr %s205, 8
        %s207 = scalar_lea.vmem %s0, %s206
        %s208 = smul.u32 2, %s22
        %p209 = scmp.lt.s32.totalorder %s21, 0
        %s210 = scalar_select %p209, %s21, 0
        %s211 = smul.addr %s210, 8
        %s212 = scalar_lea.vmem %s1, %s211
        %p213 = scmp.lt.s32.totalorder %s21, 0
        %s214 = scalar_select %p213, %s21, 0
        %s215 = scalar_lea.vmem %s2, %s214
        %s216 = smul.u32 2, %s22
        %v217 = vld [vmem:[%s207] sm:$0xff]
        %v218 = vld [vmem:[%s207 + $0x8] sm:$0xff]
        %v219 = vld [vmem:[%s212] sm:$0xff]
        %v220 = vld [vmem:[%s212 + $0x8] sm:$0xff]
        %v221 = vld [vmem:[%s212 + $0x10] sm:$0xff]
        %v222 = vld [vmem:[%s212 + $0x18] sm:$0xff]
        %v223 = vld [vmem:[%s212 + $0x20] sm:$0xff]
        %v224 = vld [vmem:[%s212 + $0x28] sm:$0xff]
        %v225 = vld [vmem:[%s212 + $0x30] sm:$0xff]
        %v226 = vld [vmem:[%s212 + $0x38] sm:$0xff]
        %v227 = vld [vmem:[%s215] sm:$0x1]
        %v229 = vperm.slane %v227, 0
        %vm231 = vcmask 523264
        %v233 = vsel %vm231, %v217, 0
        %v236 = vsel %vm231, %v218, 0
        %238 = vmatpush.msra.mxu0 0.0
        %239 = vmatpush.msra.mxu0 0.0
        %240 = vmatpush.msra.mxu0 0.0
        %241 = vmatpush.msra.mxu0 0.0
        %242 = vmatpush.msra.mxu0 0.0
        %243 = vmatpush.msra.mxu0 0.0
        %244 = vmatpush.msra.mxu0 0.0
        %245 = vmatpush.msra.mxu0 0.0
        %246 = vmatpush.msra.mxu0 %v226
        %247 = vmatpush.msra.mxu0 %v225
        %248 = vmatpush.msra.mxu0 %v224
        %249 = vmatpush.msra.mxu0 %v223
        %250 = vmatpush.msra.mxu0 %v222
        %251 = vmatpush.msra.mxu0 %v221
        %252 = vmatpush.msra.mxu0 %v220
        %253 = vmatpush.msra.mxu0 %v219
        %254 = vmatmul.f32.gmra.mxu0 %v233
        %v255 = vpop.f32.mrf.mxu0
        %v256 = vadd.f32 %v229, %v255
        %257 = vmatmul.f32.gmra.mxu0 %v236
        %v258 = vpop.f32.mrf.mxu0
        %v259 = vadd.f32 %v229, %v258
        %260 = vdwg.mxu0
        %261 = vst [vmem:[%s202] sm:$0xff] %v256
        %262 = vst [vmem:[%s202 + $0x8] sm:$0xff] %v259
        %s263 = sand.u32 %s117, 1
        %s264 = scalar_lea.sflag [#allocation3], %s263
        %s265 = sand.u32 %s117, 1
        %s266 = smul.addr %s265, 16
        %s267 = scalar_lea.vmem [#allocation2], %s266
        // Predicated region
        $region33: #{patch_embed.1} parent=31 // pred_check
          %p268 = pneg %p127
        $region34: #{patch_embed.1} parent=31 // pred_check_branch
          %270 = sbr.rel (%p268) target = $region36
        $region35: #{patch_embed.1} parent=31 // pred_region
          %s271 = smul.u32 2, %s22
          %273 = vsyncadd %s264, 0
          %s274 = sadd.s32 %s21, %s271
          %s275 = smul.addr %s274, 8
          %s276 = scalar_lea.hbm %s3, %s275
          %s277 = sshll.u32 %s267, 4
          %s278 = int_to_ptr.vmem [resolvable:$true] %s277
          %s279 = sshll.u32 %s276, 4
          %s280 = int_to_ptr.hbm [resolvable:$true] %s279
          %285 = dma.vmem_to_hbm [thread:$0]  %s278, 256, %s280, %s264, 128, 128, 8
        $region36: #{patch_embed.1} parent=31 // pred_fallthru
          _
      $region32: #{patch_embed.1} parent=5 // pred_fallthru
        _
      %p286 = scmp.le.s32.totalorder 2, %s12
      // Predicated region
      $region37: #{patch_embed.1} parent=5 // pred_check
        %p287 = pneg %p286
      $region38: #{patch_embed.1} parent=5 // pred_check_branch
        %289 = sbr.rel (%p287) target = $region40
      $region39: #{patch_embed.1} parent=5 // pred_region
        %s290 = ssub.s32 %s12, 2
        // Predicated region
        $region41: #{patch_embed.1} parent=39 // pred_check
          %p291 = pneg %p133
        $region42: #{patch_embed.1} parent=39 // pred_check_branch
          %293 = sbr.rel (%p291) target = $region44
        $region43: #{patch_embed.1} parent=39 // pred_region
          %s294 = sand.u32 %s118, 1
          %s295 = scalar_lea.sflag [#allocation3], %s294
          %s296 = sand.u32 %s118, 1
          %s297 = smul.addr %s296, 16
          %s298 = scalar_lea.vmem [#allocation2], %s297
          %300 = dma.done %s295, 256
        $region44: #{patch_embed.1} parent=39 // pred_fallthru
          _
      $region40: #{patch_embed.1} parent=5 // pred_fallthru
        _
    $region6: #{patch_embed.1} parent=1 // loop_footer
      %s16 = sadd.s32 1, %s12
    $region7: #{patch_embed.1} parent=1 // loop_footer_branch
      %11 = sbr.rel target = $region3
    $region8: #{patch_embed.1} parent=1 // loop_exit
      _
    %301 = vsyncpa [#allocation3], 1
    %s302 = scalar_lea.sflag [#allocation3], 1
    %303 = vsyncpa %s302, 1

</llo_original>
